<compile_context>
chip_gen: v7x
topology: tpu7x:2x2x1
jax: 0.10.0
libtpu: 0.0.40
codegen_flags: <defaults>
</compile_context>

<pallas_src>
import functools

import jax
import jax.numpy as jnp
from jax.experimental import pallas as pl
from jax.experimental.pallas import tpu as pltpu

MLP_HIDDEN_LAYER_NEURONS = 8
LEAKY_SLOPE = 0.01                           # torch.nn.LeakyReLU default negative_slope
PACK = 16                                    # batch rows packed per lane-row
HPACK = PACK * MLP_HIDDEN_LAYER_NEURONS      # 16 * 8 = 128 lanes (one lane tile)
TM_MAX = 1024                                # max packed rows per grid step (=16384 rows)


def _leaky_relu(x):
    # max(x, a*x) == LeakyReLU(x) for 0 < a < 1  (2 VALU ops)
    return jnp.maximum(x, LEAKY_SLOPE * x)


def mlp_kernel(x_ref, w1_ref, b1_ref, w2_ref, b2_ref, w3_ref, b3_ref, o_ref):
    x = x_ref[...]                                                     # (TM, PACK*ni)
    h = jnp.dot(x, w1_ref[...], preferred_element_type=jnp.float32) + b1_ref[...]
    h = _leaky_relu(h)                                                 # (TM, 128)
    h = jnp.dot(h, w2_ref[...], preferred_element_type=jnp.float32) + b2_ref[...]
    h = _leaky_relu(h)
    h = jnp.dot(h, w3_ref[...], preferred_element_type=jnp.float32) + b3_ref[...]
    o_ref[...] = jnp.tanh(h).astype(o_ref.dtype)                       # (TM, PACK*no)


def _cdiv(a, b):
    return -(-a // b)


def _round_up(v, m):
    return _cdiv(v, m) * m


def _choose_tiling(m):
    """Pick (tm, grid) over m packed rows.

    * tm is a multiple of 8 (sublane) unless it covers the whole array.
    * grid step count is kept even (v7x has 2 TensorCores; odd grids give a
      2:1 imbalance) and >= 2 whenever there is enough work to split.
    * tm <= TM_MAX keeps VMEM tiny while amortizing per-step overhead.
    The last block may be partial; Pallas masks out-of-bounds writes.
    """
    if m <= 8:
        return m, 1                      # single block == full dim (no 8-divisibility needed)
    steps = max(2, _cdiv(m, TM_MAX))
    if steps % 2:
        steps += 1                       # even step count for megacore balance
    tm = _round_up(_cdiv(m, steps), 8)
    grid = _cdiv(m, tm)                  # == steps except extreme corner cases
    return tm, grid


@functools.partial(jax.jit, static_argnames=("num_inputs", "num_outputs"))
def three_layer_mlp_s(x, params, *, num_inputs, num_outputs):
    """x: (N, num_inputs) float32. params: dict of (in,out) weights + (out,) biases."""
    n = x.shape[0]
    ni, no = num_inputs, num_outputs

    # Pad the batch only to a multiple of PACK (no-op when already aligned).
    n_pack = _round_up(max(n, PACK), PACK)
    if n_pack != n:
        x = jnp.pad(x, ((0, n_pack - n), (0, 0)))
    m = n_pack // PACK
    xp = x.reshape(m, PACK * ni)         # free, contiguous reinterpretation

    # Block-diagonal weights: PACK copies of each tiny layer along the diagonal.
    # Exact in f32 (zero off-diagonal blocks; leaky(0) = 0).  Tiny -> grid-resident.
    eye = jnp.eye(PACK, dtype=jnp.float32)
    w1 = jnp.kron(eye, params["w1"].astype(jnp.float32))    # (PACK*ni, 128)
    w2 = jnp.kron(eye, params["w2"].astype(jnp.float32))    # (128, 128)
    w3 = jnp.kron(eye, params["w3"].astype(jnp.float32))    # (128, PACK*no)
    b1 = jnp.tile(params["b1"].astype(jnp.float32), PACK)[None, :]   # (1, 128)
    b2 = jnp.tile(params["b2"].astype(jnp.float32), PACK)[None, :]   # (1, 128)
    b3 = jnp.tile(params["b3"].astype(jnp.float32), PACK)[None, :]   # (1, PACK*no)

    tm, grid = _choose_tiling(m)
    const = lambda i: (0, 0)             # weights/biases stay resident in VMEM

    out = pl.pallas_call(
        mlp_kernel,
        out_shape=jax.ShapeDtypeStruct((m, PACK * no), jnp.float32),
        grid_spec=pltpu.PrefetchScalarGridSpec(
            num_scalar_prefetch=0,
            grid=(grid,),
            in_specs=[
                pl.BlockSpec((tm, PACK * ni), lambda i: (i, 0)),   # packed x stream
                pl.BlockSpec((PACK * ni, HPACK), const),
                pl.BlockSpec((1, HPACK), const),
                pl.BlockSpec((HPACK, HPACK), const),
                pl.BlockSpec((1, HPACK), const),
                pl.BlockSpec((HPACK, PACK * no), const),
                pl.BlockSpec((1, PACK * no), const),
            ],
            out_specs=pl.BlockSpec((tm, PACK * no), lambda i: (i, 0)),
        ),
        compiler_params=pltpu.CompilerParams(
            dimension_semantics=("parallel",)
        ),
    )(xp, w1, b1, w2, b2, w3, b3)

    out = out.reshape(n_pack, no)        # free reinterpretation back to rows
    return out[:n] if n_pack != n else out


def init_params(key, num_inputs, num_outputs):
    """Deterministic init mimicking torch.nn.Linear (U(-1/sqrt(fan_in), 1/sqrt(fan_in)))."""
    h = MLP_HIDDEN_LAYER_NEURONS
    ks = jax.random.split(key, 6)

    def lin(kw, kb, fan_in, fan_out):
        bound = 1.0 / jnp.sqrt(fan_in)
        w = jax.random.uniform(kw, (fan_in, fan_out), jnp.float32, -bound, bound)
        b = jax.random.uniform(kb, (fan_out,), jnp.float32, -bound, bound)
        return w, b

    w1, b1 = lin(ks[0], ks[1], num_inputs, h)
    w2, b2 = lin(ks[2], ks[3], h, h)
    w3, b3 = lin(ks[4], ks[5], h, num_outputs)
    return {"w1": w1, "b1": b1, "w2": w2, "b2": b2, "w3": w3, "b3": b3}


def reference_mlp(x, params):
    h = _leaky_relu(x @ params["w1"] + params["b1"])
    h = _leaky_relu(h @ params["w2"] + params["b2"])
    return jnp.tanh(h @ params["w3"] + params["b3"])


def _check(batch, num_inputs, num_outputs, seed):
    key = jax.random.PRNGKey(seed)
    kx, kp = jax.random.split(key)
    x = jax.random.normal(kx, (batch, num_inputs), jnp.float32)
    params = init_params(kp, num_inputs, num_outputs)

    out = three_layer_mlp_s(x, params, num_inputs=num_inputs, num_outputs=num_outputs)
    out = jax.block_until_ready(out)

    ref = reference_mlp(x, params)
    assert out.shape == (batch, num_outputs), out.shape
    assert jnp.allclose(out, ref, atol=1e-5, rtol=1e-5), "mismatch vs reference"


if __name__ == "__main__":
    # Small canonical case (batch multiple of PACK -> zero wrapper pad/slice).
    _check(batch=16, num_inputs=4, num_outputs=3, seed=0)
    # Ragged batch + odd feature widths (pads to 304, grid=2, masked partial last block).
    _check(batch=300, num_inputs=5, num_outputs=2, seed=0)
    # Larger ragged batch exercising a multi-step even grid.
    _check(batch=1000, num_inputs=4, num_outputs=3, seed=0)
    print("KERNEL_OK")
</pallas_src>

<mosaic_0001>
module attributes {stable_mosaic.version = 11 : i64} {
  func.func @mlp_kernel(%arg0: i32, %arg1: memref<1x64xf32, #tpu.memory_space<vmem>>, %arg2: memref<64x128xf32, #tpu.memory_space<vmem>>, %arg3: memref<1x128xf32, #tpu.memory_space<vmem>>, %arg4: memref<128x128xf32, #tpu.memory_space<vmem>>, %arg5: memref<1x128xf32, #tpu.memory_space<vmem>>, %arg6: memref<128x48xf32, #tpu.memory_space<vmem>>, %arg7: memref<1x48xf32, #tpu.memory_space<vmem>>, %arg8: memref<1x48xf32, #tpu.memory_space<vmem>>) attributes {dimension_semantics = [#tpu.dimension_semantics<parallel>], iteration_bounds = array<i64: 1>, scalar_prefetch = 0 : i64, scratch_operands = 0 : i64, tpu.core_type = #tpu.core_type<tc>, window_params = [{transform_indices = @transform_0, window_bounds = array<i64: 1, 64>}, {pipeline_mode = #tpu.pipeline_mode<synchronous>, transform_indices = @transform_1, window_bounds = array<i64: 64, 128>}, {pipeline_mode = #tpu.pipeline_mode<synchronous>, transform_indices = @transform_2, window_bounds = array<i64: 1, 128>}, {pipeline_mode = #tpu.pipeline_mode<synchronous>, transform_indices = @transform_3, window_bounds = array<i64: 128, 128>}, {pipeline_mode = #tpu.pipeline_mode<synchronous>, transform_indices = @transform_4, window_bounds = array<i64: 1, 128>}, {pipeline_mode = #tpu.pipeline_mode<synchronous>, transform_indices = @transform_5, window_bounds = array<i64: 128, 48>}, {pipeline_mode = #tpu.pipeline_mode<synchronous>, transform_indices = @transform_6, window_bounds = array<i64: 1, 48>}, {transform_indices = @transform_7, window_bounds = array<i64: 1, 48>}]} {
    %c0 = arith.constant 0 : index
    %c0_0 = arith.constant 0 : index
    %0 = vector.load %arg1[%c0, %c0_0] : memref<1x64xf32, #tpu.memory_space<vmem>>, vector<1x64xf32>
    %c0_1 = arith.constant 0 : index
    %c0_2 = arith.constant 0 : index
    %1 = vector.load %arg2[%c0_1, %c0_2] : memref<64x128xf32, #tpu.memory_space<vmem>>, vector<64x128xf32>
    %cst = arith.constant dense<0.000000e+00> : vector<1x128xf32>
    %2 = tpu.matmul %0, %1, %cst {dimension_numbers = #tpu.dot_dimension_numbers<[1], [0], [0], [1], [0, 0, 1, 1], [], []>} : vector<1x64xf32>, vector<64x128xf32>, vector<1x128xf32> -> vector<1x128xf32>
    %c0_3 = arith.constant 0 : index
    %c0_4 = arith.constant 0 : index
    %3 = vector.load %arg3[%c0_3, %c0_4] : memref<1x128xf32, #tpu.memory_space<vmem>>, vector<1x128xf32>
    %4 = arith.addf %2, %3 : vector<1x128xf32>
    %cst_5 = arith.constant 0.00999999977 : f32
    %5 = vector.broadcast %cst_5 : f32 to vector<1x128xf32>
    %6 = arith.mulf %5, %4 : vector<1x128xf32>
    %7 = arith.maximumf %4, %6 : vector<1x128xf32>
    %c0_6 = arith.constant 0 : index
    %c0_7 = arith.constant 0 : index
    %8 = vector.load %arg4[%c0_6, %c0_7] : memref<128x128xf32, #tpu.memory_space<vmem>>, vector<128x128xf32>
    %cst_8 = arith.constant dense<0.000000e+00> : vector<1x128xf32>
    %9 = tpu.matmul %7, %8, %cst_8 {dimension_numbers = #tpu.dot_dimension_numbers<[1], [0], [0], [1], [0, 0, 1, 1], [], []>} : vector<1x128xf32>, vector<128x128xf32>, vector<1x128xf32> -> vector<1x128xf32>
    %c0_9 = arith.constant 0 : index
    %c0_10 = arith.constant 0 : index
    %10 = vector.load %arg5[%c0_9, %c0_10] : memref<1x128xf32, #tpu.memory_space<vmem>>, vector<1x128xf32>
    %11 = arith.addf %9, %10 : vector<1x128xf32>
    %cst_11 = arith.constant 0.00999999977 : f32
    %12 = vector.broadcast %cst_11 : f32 to vector<1x128xf32>
    %13 = arith.mulf %12, %11 : vector<1x128xf32>
    %14 = arith.maximumf %11, %13 : vector<1x128xf32>
    %c0_12 = arith.constant 0 : index
    %c0_13 = arith.constant 0 : index
    %15 = vector.load %arg6[%c0_12, %c0_13] : memref<128x48xf32, #tpu.memory_space<vmem>>, vector<128x48xf32>
    %cst_14 = arith.constant dense<0.000000e+00> : vector<1x48xf32>
    %16 = tpu.matmul %14, %15, %cst_14 {dimension_numbers = #tpu.dot_dimension_numbers<[1], [0], [0], [1], [0, 0, 1, 1], [], []>} : vector<1x128xf32>, vector<128x48xf32>, vector<1x48xf32> -> vector<1x48xf32>
    %c0_15 = arith.constant 0 : index
    %c0_16 = arith.constant 0 : index
    %17 = vector.load %arg7[%c0_15, %c0_16] : memref<1x48xf32, #tpu.memory_space<vmem>>, vector<1x48xf32>
    %18 = arith.addf %16, %17 : vector<1x48xf32>
    %19 = math.tanh %18 : vector<1x48xf32>
    %c0_17 = arith.constant 0 : index
    %c0_18 = arith.constant 0 : index
    %20 = vector.load %arg8[%c0_17, %c0_18] : memref<1x48xf32, #tpu.memory_space<vmem>>, vector<1x48xf32>
    tpu.vector_store %arg8[%c0_17, %c0_18], %19 {strides = array<i32>} : memref<1x48xf32, #tpu.memory_space<vmem>>, vector<1x48xf32>,
    return
  }
  func.func @transform_0(%arg0: i32) -> (i32, i32) {
    %c0_i32 = arith.constant 0 : i32
    %c0_i32_0 = arith.constant 0 : i32
    return %arg0, %c0_i32 : i32, i32
  }
  func.func @transform_1(%arg0: i32) -> (i32, i32) {
    %c0_i32 = arith.constant 0 : i32
    %c0_i32_0 = arith.constant 0 : i32
    %c0_i32_1 = arith.constant 0 : i32
    return %c0_i32, %c0_i32_0 : i32, i32
  }
  func.func @transform_2(%arg0: i32) -> (i32, i32) {
    %c0_i32 = arith.constant 0 : i32
    %c0_i32_0 = arith.constant 0 : i32
    %c0_i32_1 = arith.constant 0 : i32
    return %c0_i32, %c0_i32_0 : i32, i32
  }
  func.func @transform_3(%arg0: i32) -> (i32, i32) {
    %c0_i32 = arith.constant 0 : i32
    %c0_i32_0 = arith.constant 0 : i32
    %c0_i32_1 = arith.constant 0 : i32
    return %c0_i32, %c0_i32_0 : i32, i32
  }
  func.func @transform_4(%arg0: i32) -> (i32, i32) {
    %c0_i32 = arith.constant 0 : i32
    %c0_i32_0 = arith.constant 0 : i32
    %c0_i32_1 = arith.constant 0 : i32
    return %c0_i32, %c0_i32_0 : i32, i32
  }
  func.func @transform_5(%arg0: i32) -> (i32, i32) {
    %c0_i32 = arith.constant 0 : i32
    %c0_i32_0 = arith.constant 0 : i32
    %c0_i32_1 = arith.constant 0 : i32
    return %c0_i32, %c0_i32_0 : i32, i32
  }
  func.func @transform_6(%arg0: i32) -> (i32, i32) {
    %c0_i32 = arith.constant 0 : i32
    %c0_i32_0 = arith.constant 0 : i32
    %c0_i32_1 = arith.constant 0 : i32
    return %c0_i32, %c0_i32_0 : i32, i32
  }
  func.func @transform_7(%arg0: i32) -> (i32, i32) {
    %c0_i32 = arith.constant 0 : i32
    %c0_i32_0 = arith.constant 0 : i32
    return %arg0, %c0_i32 : i32, i32
  }
}

</mosaic_0001>

<llo_original>
// kernel: tile.18
$region0: #{tile.18}
  #allocation0 [shape = 's32[1]{0}', space=sflag, size = 0x4, scoped, tag = 'scoped memory for tile.18']
  %s0 = inlined_call_operand.vmem [shape: f32[8], index: 0, kind: input, shape index: {}]
  %s1 = inlined_call_operand.vmem [shape: f32[16,8], index: 1, kind: output, shape index: {}]
  // Predicated region
  $region2: #{tile.18} parent=0 // pred_check
    _
  $region3: #{tile.18} parent=0 // pred_check_branch
    %3 = sbr.rel (0) target = $region5
  $region4: #{tile.18} parent=0 // pred_region
    _
  $region5: #{tile.18} parent=0 // pred_fallthru
    _
  %v4 = vld [vmem:[%s0] ss:$0 sm:$0xff]
  %5 = vst [vmem:[%s1] sm:$0xff] %v4
  %s6 = scalar_lea.vmem %s1, 8
  %7 = vst [vmem:[%s6] sm:$0xff] %v4

// kernel: tile.19
$region0: #{tile.19}
  %s0 = inlined_call_operand.vmem [shape: f32[16,8], index: 0, kind: input, shape index: {}]
  %s1 = inlined_call_operand.vmem [shape: f32[1,128], index: 1, kind: output, shape index: {}]
  $region1: #{tile.19} parent=0
    #allocation0 [shape = 'u8[4096]{0}', space=vmem, size = 0x1000, scoped, tag = 'scoped mem for output reshape']
    %v2 = vld [vmem:[%s0] sm:$0x1]
    %vm3 = vcmask 64512
    %4 = vst.msk [vmem:[#allocation0] sm:$0x1] %vm3, %v2
    %s5 = scalar_lea.vmem %s0, 15
    %v6 = vld [vmem:[%s5] sm:$0x1]
    %7 = vrot.lane.b32.xlu0 %v6, 120
    %v8 = vpop.permute.xlu0 %7
    %vm9 = vcmask 1048512
    %10 = vst.msk [vmem:[#allocation0] sm:$0x1] %vm9, %v8
    %s11 = scalar_lea.vmem %s0, 14
    %v12 = vld [vmem:[%s11] sm:$0x1]
    %13 = vrot.lane.b32.xlu0 %v12, 112
    %v14 = vpop.permute.xlu0 %13
    %vm15 = vcmask 982912
    %16 = vst.msk [vmem:[#allocation0] sm:$0x1] %vm15, %v14
    %s17 = scalar_lea.vmem %s0, 13
    %v18 = vld [vmem:[%s17] sm:$0x1]
    %19 = vrot.lane.b32.xlu0 %v18, 104
    %v20 = vpop.permute.xlu0 %19
    %vm21 = vcmask 917312
    %22 = vst.msk [vmem:[#allocation0] sm:$0x1] %vm21, %v20
    %s23 = scalar_lea.vmem %s0, 12
    %v24 = vld [vmem:[%s23] sm:$0x1]
    %25 = vrot.lane.b32.xlu0 %v24, 96
    %v26 = vpop.permute.xlu0 %25
    %vm27 = vcmask 851712
    %28 = vst.msk [vmem:[#allocation0] sm:$0x1] %vm27, %v26
    %s29 = scalar_lea.vmem %s0, 11
    %v30 = vld [vmem:[%s29] sm:$0x1]
    %31 = vrot.lane.b32.xlu0 %v30, 88
    %v32 = vpop.permute.xlu0 %31
    %vm33 = vcmask 786112
    %34 = vst.msk [vmem:[#allocation0] sm:$0x1] %vm33, %v32
    %s35 = scalar_lea.vmem %s0, 10
    %v36 = vld [vmem:[%s35] sm:$0x1]
    %37 = vrot.lane.b32.xlu0 %v36, 80
    %v38 = vpop.permute.xlu0 %37
    %vm39 = vcmask 720512
    %40 = vst.msk [vmem:[#allocation0] sm:$0x1] %vm39, %v38
    %s41 = scalar_lea.vmem %s0, 9
    %v42 = vld [vmem:[%s41] sm:$0x1]
    %43 = vrot.lane.b32.xlu0 %v42, 72
    %v44 = vpop.permute.xlu0 %43
    %vm45 = vcmask 654912
    %46 = vst.msk [vmem:[#allocation0] sm:$0x1] %vm45, %v44
    %s47 = scalar_lea.vmem %s0, 8
    %v48 = vld [vmem:[%s47] sm:$0x1]
    %49 = vrot.lane.b32.xlu0 %v48, 64
    %v50 = vpop.permute.xlu0 %49
    %vm51 = vcmask 589312
    %52 = vst.msk [vmem:[#allocation0] sm:$0x1] %vm51, %v50
    %s53 = scalar_lea.vmem %s0, 7
    %v54 = vld [vmem:[%s53] sm:$0x1]
    %55 = vrot.lane.b32.xlu0 %v54, 56
    %v56 = vpop.permute.xlu0 %55
    %vm57 = vcmask 523712
    %58 = vst.msk [vmem:[#allocation0] sm:$0x1] %vm57, %v56
    %s59 = scalar_lea.vmem %s0, 6
    %v60 = vld [vmem:[%s59] sm:$0x1]
    %61 = vrot.lane.b32.xlu0 %v60, 48
    %v62 = vpop.permute.xlu0 %61
    %vm63 = vcmask 458112
    %64 = vst.msk [vmem:[#allocation0] sm:$0x1] %vm63, %v62
    %s65 = scalar_lea.vmem %s0, 5
    %v66 = vld [vmem:[%s65] sm:$0x1]
    %67 = vrot.lane.b32.xlu0 %v66, 40
    %v68 = vpop.permute.xlu0 %67
    %vm69 = vcmask 392512
    %70 = vst.msk [vmem:[#allocation0] sm:$0x1] %vm69, %v68
    %s71 = scalar_lea.vmem %s0, 4
    %v72 = vld [vmem:[%s71] sm:$0x1]
    %73 = vrot.lane.b32.xlu0 %v72, 32
    %v74 = vpop.permute.xlu0 %73
    %vm75 = vcmask 326912
    %76 = vst.msk [vmem:[#allocation0] sm:$0x1] %vm75, %v74
    %s77 = scalar_lea.vmem %s0, 3
    %v78 = vld [vmem:[%s77] sm:$0x1]
    %79 = vrot.lane.b32.xlu0 %v78, 24
    %v80 = vpop.permute.xlu0 %79
    %vm81 = vcmask 261312
    %82 = vst.msk [vmem:[#allocation0] sm:$0x1] %vm81, %v80
    %s83 = scalar_lea.vmem %s0, 2
    %v84 = vld [vmem:[%s83] sm:$0x1]
    %85 = vrot.lane.b32.xlu0 %v84, 16
    %v86 = vpop.permute.xlu0 %85
    %vm87 = vcmask 195712
    %88 = vst.msk [vmem:[#allocation0] sm:$0x1] %vm87, %v86
    %s89 = scalar_lea.vmem %s0, 1
    %v90 = vld [vmem:[%s89] sm:$0x1]
    %91 = vrot.lane.b32.xlu0 %v90, 8
    %v92 = vpop.permute.xlu0 %91
    %vm93 = vcmask 130112
    %94 = vst.msk [vmem:[#allocation0] sm:$0x1] %vm93, %v92
    %s96 = sshllo.u32 0, 1
    %v98 = vld [vmem:[#allocation0] sm:%s96]
    %s99 = sshllo.u32 0, 1
    %100 = vst [vmem:[%s1] sm:%s99] %v98

// kernel: tile.28
$region0: #{tile.28}
  #allocation0 [shape = 's32[1]{0}', space=sflag, size = 0x4, scoped, tag = 'scoped memory for tile.28']
  %s0 = inlined_call_operand.vmem [shape: f32[3], index: 0, kind: input, shape index: {}]
  %s1 = inlined_call_operand.vmem [shape: f32[16,3], index: 1, kind: output, shape index: {}]
  // Predicated region
  $region2: #{tile.28} parent=0 // pred_check
    _
  $region3: #{tile.28} parent=0 // pred_check_branch
    %3 = sbr.rel (0) target = $region5
  $region4: #{tile.28} parent=0 // pred_region
    _
  $region5: #{tile.28} parent=0 // pred_fallthru
    _
  %v4 = vld [vmem:[%s0] ss:$0 sm:$0xff]
  %5 = vst [vmem:[%s1] sm:$0xff] %v4
  %s6 = scalar_lea.vmem %s1, 8
  %7 = vst [vmem:[%s6] sm:$0xff] %v4

// kernel: tile.29
$region0: #{tile.29}
  %s0 = inlined_call_operand.vmem [shape: f32[16,3], index: 0, kind: input, shape index: {}]
  %s1 = inlined_call_operand.vmem [shape: f32[1,48], index: 1, kind: output, shape index: {}]
  $region1: #{tile.29} parent=0
    #allocation0 [shape = 'u8[4096]{0}', space=vmem, size = 0x1000, scoped, tag = 'scoped mem for output reshape']
    %v2 = vld [vmem:[%s0] sm:$0x1]
    %vm3 = vcmask 23552
    %4 = vst.msk [vmem:[#allocation0] sm:$0x1] %vm3, %v2
    %s5 = scalar_lea.vmem %s0, 15
    %v6 = vld [vmem:[%s5] sm:$0x1]
    %7 = vrot.lane.b32.xlu0 %v6, 45
    %v8 = vpop.permute.xlu0 %7
    %vm9 = vcmask 392552
    %10 = vst.msk [vmem:[#allocation0] sm:$0x1] %vm9, %v8
    %s11 = scalar_lea.vmem %s0, 14
    %v12 = vld [vmem:[%s11] sm:$0x1]
    %13 = vrot.lane.b32.xlu0 %v12, 42
    %v14 = vpop.permute.xlu0 %13
    %vm15 = vcmask 367952
    %16 = vst.msk [vmem:[#allocation0] sm:$0x1] %vm15, %v14
    %s17 = scalar_lea.vmem %s0, 13
    %v18 = vld [vmem:[%s17] sm:$0x1]
    %19 = vrot.lane.b32.xlu0 %v18, 39
    %v20 = vpop.permute.xlu0 %19
    %vm21 = vcmask 343352
    %22 = vst.msk [vmem:[#allocation0] sm:$0x1] %vm21, %v20
    %s23 = scalar_lea.vmem %s0, 12
    %v24 = vld [vmem:[%s23] sm:$0x1]
    %25 = vrot.lane.b32.xlu0 %v24, 36
    %v26 = vpop.permute.xlu0 %25
    %vm27 = vcmask 318752
    %28 = vst.msk [vmem:[#allocation0] sm:$0x1] %vm27, %v26
    %s29 = scalar_lea.vmem %s0, 11
    %v30 = vld [vmem:[%s29] sm:$0x1]
    %31 = vrot.lane.b32.xlu0 %v30, 33
    %v32 = vpop.permute.xlu0 %31
    %vm33 = vcmask 294152
    %34 = vst.msk [vmem:[#allocation0] sm:$0x1] %vm33, %v32
    %s35 = scalar_lea.vmem %s0, 10
    %v36 = vld [vmem:[%s35] sm:$0x1]
    %37 = vrot.lane.b32.xlu0 %v36, 30
    %v38 = vpop.permute.xlu0 %37
    %vm39 = vcmask 269552
    %40 = vst.msk [vmem:[#allocation0] sm:$0x1] %vm39, %v38
    %s41 = scalar_lea.vmem %s0, 9
    %v42 = vld [vmem:[%s41] sm:$0x1]
    %43 = vrot.lane.b32.xlu0 %v42, 27
    %v44 = vpop.permute.xlu0 %43
    %vm45 = vcmask 244952
    %46 = vst.msk [vmem:[#allocation0] sm:$0x1] %vm45, %v44
    %s47 = scalar_lea.vmem %s0, 8
    %v48 = vld [vmem:[%s47] sm:$0x1]
    %49 = vrot.lane.b32.xlu0 %v48, 24
    %v50 = vpop.permute.xlu0 %49
    %vm51 = vcmask 220352
    %52 = vst.msk [vmem:[#allocation0] sm:$0x1] %vm51, %v50
    %s53 = scalar_lea.vmem %s0, 7
    %v54 = vld [vmem:[%s53] sm:$0x1]
    %55 = vrot.lane.b32.xlu0 %v54, 21
    %v56 = vpop.permute.xlu0 %55
    %vm57 = vcmask 195752
    %58 = vst.msk [vmem:[#allocation0] sm:$0x1] %vm57, %v56
    %s59 = scalar_lea.vmem %s0, 6
    %v60 = vld [vmem:[%s59] sm:$0x1]
    %61 = vrot.lane.b32.xlu0 %v60, 18
    %v62 = vpop.permute.xlu0 %61
    %vm63 = vcmask 171152
    %64 = vst.msk [vmem:[#allocation0] sm:$0x1] %vm63, %v62
    %s65 = scalar_lea.vmem %s0, 5
    %v66 = vld [vmem:[%s65] sm:$0x1]
    %67 = vrot.lane.b32.xlu0 %v66, 15
    %v68 = vpop.permute.xlu0 %67
    %vm69 = vcmask 146552
    %70 = vst.msk [vmem:[#allocation0] sm:$0x1] %vm69, %v68
    %s71 = scalar_lea.vmem %s0, 4
    %v72 = vld [vmem:[%s71] sm:$0x1]
    %73 = vrot.lane.b32.xlu0 %v72, 12
    %v74 = vpop.permute.xlu0 %73
    %vm75 = vcmask 121952
    %76 = vst.msk [vmem:[#allocation0] sm:$0x1] %vm75, %v74
    %s77 = scalar_lea.vmem %s0, 3
    %v78 = vld [vmem:[%s77] sm:$0x1]
    %79 = vrot.lane.b32.xlu0 %v78, 9
    %v80 = vpop.permute.xlu0 %79
    %vm81 = vcmask 97352
    %82 = vst.msk [vmem:[#allocation0] sm:$0x1] %vm81, %v80
    %s83 = scalar_lea.vmem %s0, 2
    %v84 = vld [vmem:[%s83] sm:$0x1]
    %85 = vrot.lane.b32.xlu0 %v84, 6
    %v86 = vpop.permute.xlu0 %85
    %vm87 = vcmask 72752
    %88 = vst.msk [vmem:[#allocation0] sm:$0x1] %vm87, %v86
    %s89 = scalar_lea.vmem %s0, 1
    %v90 = vld [vmem:[%s89] sm:$0x1]
    %91 = vrot.lane.b32.xlu0 %v90, 3
    %v92 = vpop.permute.xlu0 %91
    %vm93 = vcmask 48152
    %94 = vst.msk [vmem:[#allocation0] sm:$0x1] %vm93, %v92
    %s96 = sshllo.u32 0, 1
    %v98 = vld [vmem:[#allocation0] sm:%s96]
    %s99 = sshllo.u32 0, 1
    %100 = vst [vmem:[%s1] sm:%s99] %v98

// kernel: three_layer_mlp_s.1
$region0: #{three_layer_mlp_s.1}
  #allocation0 [shape = 'u32[]', space=smem, size = 0x4, offset = 0x4, fixed_abs, tag = 'smem constant byte address 0x4 - core index']
  #allocation1 [shape = 'u32[144,128]{1,0:T(1,128)}', space=vmem, size = 0x12000, scoped, tag = 'internal scratch']
  %s0 = inlined_call_operand.vmem [shape: f32[1,64], index: 0, kind: input, shape index: {}]
  %s1 = inlined_call_operand.vmem [shape: f32[64,128], index: 1, kind: input, shape index: {}]
  %s2 = inlined_call_operand.vmem [shape: f32[1,128], index: 2, kind: input, shape index: {}]
  %s3 = inlined_call_operand.vmem [shape: f32[128,128], index: 3, kind: input, shape index: {}]
  %s4 = inlined_call_operand.vmem [shape: f32[1,128], index: 4, kind: input, shape index: {}]
  %s5 = inlined_call_operand.vmem [shape: f32[128,48], index: 5, kind: input, shape index: {}]
  %s6 = inlined_call_operand.vmem [shape: f32[1,48], index: 6, kind: input, shape index: {}]
  %s7 = inlined_call_operand.vmem [shape: f32[1,48], index: 7, kind: output, shape index: {}]
  %s8 = sld [smem:[#allocation0]]
  $region38: #{three_layer_mlp_s.1} parent=0
    _
  %s10 = ssub.s32 1, %s8
  %s11 = scalar_select 0, %s10, %s8
  // Predicated region
  $region2: #{three_layer_mlp_s.1} parent=0 // pred_check
    _
  $region3: #{three_layer_mlp_s.1} parent=0 // pred_check_branch
    %13 = sbr.rel (0) target = $region5
  $region4: #{three_layer_mlp_s.1} parent=0 // pred_region
    _
  $region5: #{three_layer_mlp_s.1} parent=0 // pred_fallthru
    _
  // Predicated region
  $region6: #{three_layer_mlp_s.1} parent=0 // pred_check
    _
  $region7: #{three_layer_mlp_s.1} parent=0 // pred_check_branch
    %15 = sbr.rel (0) target = $region9
  $region8: #{three_layer_mlp_s.1} parent=0 // pred_region
    _
  $region9: #{three_layer_mlp_s.1} parent=0 // pred_fallthru
    _
  // Predicated region
  $region10: #{three_layer_mlp_s.1} parent=0 // pred_check
    _
  $region11: #{three_layer_mlp_s.1} parent=0 // pred_check_branch
    %17 = sbr.rel (0) target = $region13
  $region12: #{three_layer_mlp_s.1} parent=0 // pred_region
    _
  $region13: #{three_layer_mlp_s.1} parent=0 // pred_fallthru
    _
  // Predicated region
  $region14: #{three_layer_mlp_s.1} parent=0 // pred_check
    _
  $region15: #{three_layer_mlp_s.1} parent=0 // pred_check_branch
    %19 = sbr.rel (0) target = $region17
  $region16: #{three_layer_mlp_s.1} parent=0 // pred_region
    _
  $region17: #{three_layer_mlp_s.1} parent=0 // pred_fallthru
    _
  // Predicated region
  $region18: #{three_layer_mlp_s.1} parent=0 // pred_check
    _
  $region19: #{three_layer_mlp_s.1} parent=0 // pred_check_branch
    %21 = sbr.rel (0) target = $region21
  $region20: #{three_layer_mlp_s.1} parent=0 // pred_region
    _
  $region21: #{three_layer_mlp_s.1} parent=0 // pred_fallthru
    _
  // Predicated region
  $region22: #{three_layer_mlp_s.1} parent=0 // pred_check
    _
  $region23: #{three_layer_mlp_s.1} parent=0 // pred_check_branch
    %23 = sbr.rel (0) target = $region25
  $region24: #{three_layer_mlp_s.1} parent=0 // pred_region
    _
  $region25: #{three_layer_mlp_s.1} parent=0 // pred_fallthru
    _
  // Predicated region
  $region26: #{three_layer_mlp_s.1} parent=0 // pred_check
    _
  $region27: #{three_layer_mlp_s.1} parent=0 // pred_check_branch
    %25 = sbr.rel (0) target = $region29
  $region28: #{three_layer_mlp_s.1} parent=0 // pred_region
    _
  $region29: #{three_layer_mlp_s.1} parent=0 // pred_fallthru
    _
  %v26 = vld [vmem:[%s0] sm:$0x1]
  %v27 = vld [vmem:[%s1] sm:$0xff]
  %v28 = vld [vmem:[%s1 + $0x8] sm:$0xff]
  %v29 = vld [vmem:[%s1 + $0x10] sm:$0xff]
  %v30 = vld [vmem:[%s1 + $0x18] sm:$0xff]
  %v31 = vld [vmem:[%s1 + $0x20] sm:$0xff]
  %v32 = vld [vmem:[%s1 + $0x28] sm:$0xff]
  %v33 = vld [vmem:[%s1 + $0x30] sm:$0xff]
  %v34 = vld [vmem:[%s1 + $0x38] sm:$0xff]
  %v35 = vld [vmem:[%s2] sm:$0x1]
  %vm36 = vcmask 523264
  %v38 = vsel %vm36, %v26, 0
  %40 = vmatprep.subr.mxu0 0.0
  %41 = vmatpush1.msra.mxu0 %v27
  %42 = vmatprep.subr.mxu0 0.0
  %43 = vmatpush1.msra.mxu0 %v28
  %44 = vmatprep.subr.mxu0 0.0
  %45 = vmatpush1.msra.mxu0 %v29
  %46 = vmatprep.subr.mxu0 0.0
  %47 = vmatpush1.msra.mxu0 %v30
  %48 = vmatprep.subr.mxu0 0.0
  %49 = vmatpush1.msra.mxu0 %v31
  %50 = vmatprep.subr.mxu0 0.0
  %51 = vmatpush1.msra.mxu0 %v32
  %52 = vmatprep.subr.mxu0 0.0
  %53 = vmatpush1.msra.mxu0 %v33
  %54 = vmatprep.subr.mxu0 0.0
  %55 = vmatpush1.msra.mxu0 %v34
  %56 = vmatprep.subr.mxu0 0.0
  %57 = vmatpush1.msra.mxu0 0.0
  %58 = vmatprep.subr.mxu0 0.0
  %59 = vmatpush1.msra.mxu0 0.0
  %60 = vmatprep.subr.mxu0 0.0
  %61 = vmatpush1.msra.mxu0 0.0
  %62 = vmatprep.subr.mxu0 0.0
  %63 = vmatpush1.msra.mxu0 0.0
  %64 = vmatprep.subr.mxu0 0.0
  %65 = vmatpush1.msra.mxu0 0.0
  %66 = vmatprep.subr.mxu0 0.0
  %67 = vmatpush1.msra.mxu0 0.0
  %68 = vmatprep.subr.mxu0 0.0
  %69 = vmatpush1.msra.mxu0 0.0
  %70 = vmatprep.subr.mxu0 0.0
  %71 = vmatpush1.msra.mxu0 0.0
  %72 = vmatprep.subr.mxu0 0.0
  %73 = vmatpush1.msra.mxu0 0.0
  %74 = vmatprep.subr.mxu0 0.0
  %75 = vmatpush1.msra.mxu0 0.0
  %76 = vmatprep.subr.mxu0 0.0
  %77 = vmatpush1.msra.mxu0 0.0
  %78 = vmatprep.subr.mxu0 0.0
  %79 = vmatpush1.msra.mxu0 0.0
  %80 = vmatprep.subr.mxu0 0.0
  %81 = vmatpush1.msra.mxu0 0.0
  %82 = vmatprep.subr.mxu0 0.0
  %83 = vmatpush1.msra.mxu0 0.0
  %84 = vmatprep.subr.mxu0 0.0
  %85 = vmatpush1.msra.mxu0 0.0
  %86 = vmatprep.subr.mxu0 0.0
  %87 = vmatpush1.msra.mxu0 0.0
  %88 = vmatprep.subr.mxu0 0.0
  %89 = vmatpush1.msra.mxu0 0.0
  %90 = vmatprep.subr.mxu0 0.0
  %91 = vmatpush1.msra.mxu0 0.0
  %92 = vmatprep.subr.mxu0 0.0
  %93 = vmatpush1.msra.mxu0 0.0
  %94 = vmatprep.subr.mxu0 0.0
  %95 = vmatpush1.msra.mxu0 0.0
  %96 = vmatprep.subr.mxu0 0.0
  %97 = vmatpush1.msra.mxu0 0.0
  %98 = vmatprep.subr.mxu0 0.0
  %99 = vmatpush1.msra.mxu0 0.0
  %100 = vmatprep.subr.mxu0 0.0
  %101 = vmatpush1.msra.mxu0 0.0
  %102 = vmatprep.subr.mxu0 0.0
  %103 = vmatpush1.msra.mxu0 0.0
  %104 = vmatprep.mubr.f32.mxu0 0.0
  %105 = vmatmul.mubr.f32.gmra.mrb[0].mxu0 %v38
  %v106 = vpop.f32.mrb[0].mxu0
  %v107 = vadd.f32 %v35, %v106
  %v108 = vpop.f32.mrb[0].mxu0
  %109 = vdwg.mxu0
  %v110 = vmul.f32 %v107, 0.01
  %v111 = vmax.f32 %v107, %v110
  %v112 = vld [vmem:[%s3] sm:$0xff]
  %v113 = vld [vmem:[%s3 + $0x8] sm:$0xff]
  %v114 = vld [vmem:[%s3 + $0x10] sm:$0xff]
  %v115 = vld [vmem:[%s3 + $0x18] sm:$0xff]
  %v116 = vld [vmem:[%s3 + $0x20] sm:$0xff]
  %v117 = vld [vmem:[%s3 + $0x28] sm:$0xff]
  %v118 = vld [vmem:[%s3 + $0x30] sm:$0xff]
  %v119 = vld [vmem:[%s3 + $0x38] sm:$0xff]
  %v120 = vld [vmem:[%s3 + $0x40] sm:$0xff]
  %v121 = vld [vmem:[%s3 + $0x48] sm:$0xff]
  %v122 = vld [vmem:[%s3 + $0x50] sm:$0xff]
  %v123 = vld [vmem:[%s3 + $0x58] sm:$0xff]
  %v124 = vld [vmem:[%s3 + $0x60] sm:$0xff]
  %v125 = vld [vmem:[%s3 + $0x68] sm:$0xff]
  %v126 = vld [vmem:[%s3 + $0x70] sm:$0xff]
  %v127 = vld [vmem:[%s3 + $0x78] sm:$0xff]
  %v128 = vld [vmem:[%s4] sm:$0x1]
  %129 = vmatprep.subr.mxu0 0.0
  %130 = vmatpush1.msra.mxu0 %v112
  %131 = vmatprep.subr.mxu0 0.0
  %132 = vmatpush1.msra.mxu0 %v113
  %133 = vmatprep.subr.mxu0 0.0
  %134 = vmatpush1.msra.mxu0 %v114
  %135 = vmatprep.subr.mxu0 0.0
  %136 = vmatpush1.msra.mxu0 %v115
  %137 = vmatprep.subr.mxu0 0.0
  %138 = vmatpush1.msra.mxu0 %v116
  %139 = vmatprep.subr.mxu0 0.0
  %140 = vmatpush1.msra.mxu0 %v117
  %141 = vmatprep.subr.mxu0 0.0
  %142 = vmatpush1.msra.mxu0 %v118
  %143 = vmatprep.subr.mxu0 0.0
  %144 = vmatpush1.msra.mxu0 %v119
  %145 = vmatprep.subr.mxu0 0.0
  %146 = vmatpush1.msra.mxu0 %v120
  %147 = vmatprep.subr.mxu0 0.0
  %148 = vmatpush1.msra.mxu0 %v121
  %149 = vmatprep.subr.mxu0 0.0
  %150 = vmatpush1.msra.mxu0 %v122
  %151 = vmatprep.subr.mxu0 0.0
  %152 = vmatpush1.msra.mxu0 %v123
  %153 = vmatprep.subr.mxu0 0.0
  %154 = vmatpush1.msra.mxu0 %v124
  %155 = vmatprep.subr.mxu0 0.0
  %156 = vmatpush1.msra.mxu0 %v125
  %157 = vmatprep.subr.mxu0 0.0
  %158 = vmatpush1.msra.mxu0 %v126
  %159 = vmatprep.subr.mxu0 0.0
  %160 = vmatpush1.msra.mxu0 %v127
  %161 = vmatprep.subr.mxu0 0.0
  %162 = vmatpush1.msra.mxu0 0.0
  %163 = vmatprep.subr.mxu0 0.0
  %164 = vmatpush1.msra.mxu0 0.0
  %165 = vmatprep.subr.mxu0 0.0
  %166 = vmatpush1.msra.mxu0 0.0
  %167 = vmatprep.subr.mxu0 0.0
  %168 = vmatpush1.msra.mxu0 0.0
  %169 = vmatprep.subr.mxu0 0.0
  %170 = vmatpush1.msra.mxu0 0.0
  %171 = vmatprep.subr.mxu0 0.0
  %172 = vmatpush1.msra.mxu0 0.0
  %173 = vmatprep.subr.mxu0 0.0
  %174 = vmatpush1.msra.mxu0 0.0
  %175 = vmatprep.subr.mxu0 0.0
  %176 = vmatpush1.msra.mxu0 0.0
  %177 = vmatprep.subr.mxu0 0.0
  %178 = vmatpush1.msra.mxu0 0.0
  %179 = vmatprep.subr.mxu0 0.0
  %180 = vmatpush1.msra.mxu0 0.0
  %181 = vmatprep.subr.mxu0 0.0
  %182 = vmatpush1.msra.mxu0 0.0
  %183 = vmatprep.subr.mxu0 0.0
  %184 = vmatpush1.msra.mxu0 0.0
  %185 = vmatprep.subr.mxu0 0.0
  %186 = vmatpush1.msra.mxu0 0.0
  %187 = vmatprep.subr.mxu0 0.0
  %188 = vmatpush1.msra.mxu0 0.0
  %189 = vmatprep.subr.mxu0 0.0
  %190 = vmatpush1.msra.mxu0 0.0
  %191 = vmatprep.subr.mxu0 0.0
  %192 = vmatpush1.msra.mxu0 0.0
  %193 = vmatprep.mubr.f32.mxu0 0.0
  %194 = vmatmul.mubr.f32.gmra.mrb[0].mxu0 %v111
  %v195 = vpop.f32.mrb[0].mxu0
  %v196 = vadd.f32 %v128, %v195
  %v197 = vpop.f32.mrb[0].mxu0
  %198 = vdwg.mxu0
  %v199 = vmul.f32 %v196, 0.01
  %v200 = vmax.f32 %v196, %v199
  %v201 = vld [vmem:[%s5] sm:$0xff]
  %v202 = vld [vmem:[%s5 + $0x8] sm:$0xff]
  %v203 = vld [vmem:[%s5 + $0x10] sm:$0xff]
  %v204 = vld [vmem:[%s5 + $0x18] sm:$0xff]
  %v205 = vld [vmem:[%s5 + $0x20] sm:$0xff]
  %v206 = vld [vmem:[%s5 + $0x28] sm:$0xff]
  %v207 = vld [vmem:[%s5 + $0x30] sm:$0xff]
  %v208 = vld [vmem:[%s5 + $0x38] sm:$0xff]
  %v209 = vld [vmem:[%s5 + $0x40] sm:$0xff]
  %v210 = vld [vmem:[%s5 + $0x48] sm:$0xff]
  %v211 = vld [vmem:[%s5 + $0x50] sm:$0xff]
  %v212 = vld [vmem:[%s5 + $0x58] sm:$0xff]
  %v213 = vld [vmem:[%s5 + $0x60] sm:$0xff]
  %v214 = vld [vmem:[%s5 + $0x68] sm:$0xff]
  %v215 = vld [vmem:[%s5 + $0x70] sm:$0xff]
  %v216 = vld [vmem:[%s5 + $0x78] sm:$0xff]
  %v217 = vld [vmem:[%s6] sm:$0x1]
  %218 = vmatprep.subr.mxu0 0.0
  %219 = vmatpush1.msra.mxu0 %v201
  %220 = vmatprep.subr.mxu0 0.0
  %221 = vmatpush1.msra.mxu0 %v202
  %222 = vmatprep.subr.mxu0 0.0
  %223 = vmatpush1.msra.mxu0 %v203
  %224 = vmatprep.subr.mxu0 0.0
  %225 = vmatpush1.msra.mxu0 %v204
  %226 = vmatprep.subr.mxu0 0.0
  %227 = vmatpush1.msra.mxu0 %v205
  %228 = vmatprep.subr.mxu0 0.0
  %229 = vmatpush1.msra.mxu0 %v206
  %230 = vmatprep.subr.mxu0 0.0
  %231 = vmatpush1.msra.mxu0 %v207
  %232 = vmatprep.subr.mxu0 0.0
  %233 = vmatpush1.msra.mxu0 %v208
  %234 = vmatprep.subr.mxu0 0.0
  %235 = vmatpush1.msra.mxu0 %v209
  %236 = vmatprep.subr.mxu0 0.0
  %237 = vmatpush1.msra.mxu0 %v210
  %238 = vmatprep.subr.mxu0 0.0
  %239 = vmatpush1.msra.mxu0 %v211
  %240 = vmatprep.subr.mxu0 0.0
  %241 = vmatpush1.msra.mxu0 %v212
  %242 = vmatprep.subr.mxu0 0.0
  %243 = vmatpush1.msra.mxu0 %v213
  %244 = vmatprep.subr.mxu0 0.0
  %245 = vmatpush1.msra.mxu0 %v214
  %246 = vmatprep.subr.mxu0 0.0
  %247 = vmatpush1.msra.mxu0 %v215
  %248 = vmatprep.subr.mxu0 0.0
  %249 = vmatpush1.msra.mxu0 %v216
  %250 = vmatprep.subr.mxu0 0.0
  %251 = vmatpush1.msra.mxu0 0.0
  %252 = vmatprep.subr.mxu0 0.0
  %253 = vmatpush1.msra.mxu0 0.0
  %254 = vmatprep.subr.mxu0 0.0
  %255 = vmatpush1.msra.mxu0 0.0
  %256 = vmatprep.subr.mxu0 0.0
  %257 = vmatpush1.msra.mxu0 0.0
  %258 = vmatprep.subr.mxu0 0.0
  %259 = vmatpush1.msra.mxu0 0.0
  %260 = vmatprep.subr.mxu0 0.0
  %261 = vmatpush1.msra.mxu0 0.0
  %262 = vmatprep.subr.mxu0 0.0
  %263 = vmatpush1.msra.mxu0 0.0
  %264 = vmatprep.subr.mxu0 0.0
  %265 = vmatpush1.msra.mxu0 0.0
  %266 = vmatprep.subr.mxu0 0.0
  %267 = vmatpush1.msra.mxu0 0.0
  %268 = vmatprep.subr.mxu0 0.0
  %269 = vmatpush1.msra.mxu0 0.0
  %270 = vmatprep.subr.mxu0 0.0
  %271 = vmatpush1.msra.mxu0 0.0
  %272 = vmatprep.subr.mxu0 0.0
  %273 = vmatpush1.msra.mxu0 0.0
  %274 = vmatprep.subr.mxu0 0.0
  %275 = vmatpush1.msra.mxu0 0.0
  %276 = vmatprep.subr.mxu0 0.0
  %277 = vmatpush1.msra.mxu0 0.0
  %278 = vmatprep.subr.mxu0 0.0
  %279 = vmatpush1.msra.mxu0 0.0
  %280 = vmatprep.subr.mxu0 0.0
  %281 = vmatpush1.msra.mxu0 0.0
  %282 = vmatprep.mubr.f32.mxu0 0.0
  %283 = vmatmul.mubr.f32.gmra.mrb[0].mxu0 %v200
  %v284 = vpop.f32.mrb[0].mxu0
  %v285 = vadd.f32 %v217, %v284
  %v286 = vpop.f32.mrb[0].mxu0
  %287 = vdwg.mxu0
  %v288 = vtanh.pop %v285
  %vm289 = vcmask 385024
  %290 = vst.msk [vmem:[%s7] sm:$0x1] %vm289, %v288
  // Predicated region
  $region30: #{three_layer_mlp_s.1} parent=0 // pred_check
    _
  $region31: #{three_layer_mlp_s.1} parent=0 // pred_check_branch
    %292 = sbr.rel (0) target = $region33
  $region32: #{three_layer_mlp_s.1} parent=0 // pred_region
    _
  $region33: #{three_layer_mlp_s.1} parent=0 // pred_fallthru
    _
  // Predicated region
  $region34: #{three_layer_mlp_s.1} parent=0 // pred_check
    _
  $region35: #{three_layer_mlp_s.1} parent=0 // pred_check_branch
    %294 = sbr.rel (0) target = $region37
  $region36: #{three_layer_mlp_s.1} parent=0 // pred_region
    _
  $region37: #{three_layer_mlp_s.1} parent=0 // pred_fallthru
    _

</llo_original>
